<compile_context>
chip_gen: v5e
topology: v5e:2x2
jax: 0.10.0
libtpu: 0.0.40
codegen_flags: <defaults>
</compile_context>

<pallas_src>
import math
import functools

import jax
import jax.numpy as jnp
from jax.experimental import pallas as pl
from jax.experimental.pallas import tpu as pltpu


# ------------------------------ Pallas kernel ------------------------------ #

def _sampler_kernel(qs_ref, mask_ref, x_ref, wkv_ref, bkv_ref, wo_ref, bo_ref,
                    o_ref, *, num_heads, block_b):
    HK, E = qs_ref.shape
    K = HK // num_heads
    N = x_ref.shape[1]

    # Fused K/V projection for all block_b batch elements in one tall matmul.
    x = x_ref[...].astype(jnp.bfloat16).reshape(block_b * N, E)      # bf16 feed
    kv = jnp.dot(x, wkv_ref[...], preferred_element_type=jnp.float32)
    kv = (kv + bkv_ref[...]).reshape(block_b, N, 2 * E)              # f32

    q_stack = qs_ref[...]          # (HK, E) bf16, pre-scaled & head-masked
    mask = mask_ref[...]           # (HK, E) f32 block-diagonal head mask
    wo = wo_ref[...]               # (E, E)  bf16
    bo = bo_ref[...]               # (1, E)  f32

    # block_b is small; static unroll keeps all matmuls lane-dense.
    for b in range(block_b):
        kp = kv[b, :, :E].astype(jnp.bfloat16)                       # (N, E)
        vp = kv[b, :, E:].astype(jnp.bfloat16)                       # (N, E)

        # Per-head scores for every head at once: row h*K+k of q_stack only
        # carries head-h channels, so one NT matmul gives (HK, N) scores.
        s = jax.lax.dot_general(q_stack, kp, (((1,), (1,)), ((), ())),
                                preferred_element_type=jnp.float32)  # (HK, N)

        # Row-wise softmax in f32; reciprocal goes to the EUP slot.
        s = s - jnp.max(s, axis=-1, keepdims=True)
        p = jnp.exp(s)
        p = p * pl.reciprocal(jnp.sum(p, axis=-1, keepdims=True), approx=True)

        # Attention * V for all heads in one matmul; the mask keeps only the
        # head-h channels on head-h rows.
        o_stack = jnp.dot(p.astype(jnp.bfloat16), vp,
                          preferred_element_type=jnp.float32) * mask  # (HK, E)

        # Collapse heads BEFORE the output projection (Wo is head-shared, so
        # the sum commutes through the matmul): 8x cheaper projection.
        o_concat = jnp.sum(o_stack.reshape(num_heads, K, E), axis=0)  # (K, E)
        out = jnp.dot(o_concat.astype(jnp.bfloat16), wo,
                      preferred_element_type=jnp.float32) + bo        # (K, E)
        o_ref[b] = out.astype(o_ref.dtype)


# ------------------------------- wrapper ----------------------------------- #

def _vmem_budget(block_b, N, E, K, H, out_bytes):
    HK = H * K
    b = 0
    b += 2 * block_b * N * E * 2               # x blocks (bf16, double-buffered)
    b += 2 * block_b * K * E * out_bytes       # out blocks (double-buffered)
    b += (2 * E * E + E * E) * 2               # wkv + wo (bf16)
    b += HK * E * (2 + 4)                      # q_stack (bf16) + mask (f32)
    b += (2 * E + E) * 4                       # biases
    b += block_b * N * 2 * E * 4               # kv slab (f32)
    b += N * 2 * E * 2                         # kp/vp (bf16)
    b += 2 * HK * N * 4                        # scores + probs (f32)
    b += 2 * HK * E * 4                        # o_stack + o_concat (f32)
    return min(int(1.5 * b) + (4 << 20), 64 << 20)


def learnable_sampler(x, query, wq, bq, wkv, bkv, wo, bo, *, num_heads,
                      block_b=None):
    """x: (B, N, E) -> (B, K, E) using a learnable static query (K, E)."""
    B, N, E = x.shape
    K = query.shape[0]
    assert E % num_heads == 0
    hd = E // num_heads
    HK = num_heads * K

    # ---- batch-invariant precompute (hoisted out of the per-step body) ----
    qp = query @ wq + bq                                     # (K, E) f32
    row_head = (jnp.arange(HK, dtype=jnp.int32) // K)[:, None]
    col_head = (jnp.arange(E, dtype=jnp.int32) // hd)[None, :]
    mask = (row_head == col_head).astype(jnp.float32)        # (HK, E)
    scale = 1.0 / math.sqrt(hd)
    q_stack = (jnp.broadcast_to(qp[None], (num_heads, K, E)).reshape(HK, E)
               * mask * scale).astype(jnp.bfloat16)          # pre-scaled/masked

    wkv_bf = wkv.astype(jnp.bfloat16)
    wo_bf = wo.astype(jnp.bfloat16)
    bkv2 = bkv.reshape(1, 2 * E).astype(jnp.float32)
    bo2 = bo.reshape(1, E).astype(jnp.float32)

    # ---- batch blocking: amortize per-step overhead, keep >=2 steps -------
    if block_b is None:
        block_b = max(1, min(8, B // 2))       # >=2 grid steps when B >= 2
    while B % block_b:
        block_b -= 1
    grid = (B // block_b,)

    full = lambda i: (0, 0)
    return pl.pallas_call(
        functools.partial(_sampler_kernel, num_heads=num_heads,
                          block_b=block_b),
        out_shape=jax.ShapeDtypeStruct((B, K, E), x.dtype),
        grid=grid,
        in_specs=[
            pl.BlockSpec((HK, E), full),                       # q_stack
            pl.BlockSpec((HK, E), full),                       # mask
            pl.BlockSpec((block_b, N, E), lambda i: (i, 0, 0)),  # x
            pl.BlockSpec((E, 2 * E), full),                    # wkv
            pl.BlockSpec((1, 2 * E), full),                    # bkv
            pl.BlockSpec((E, E), full),                        # wo
            pl.BlockSpec((1, E), full),                        # bo
        ],
        out_specs=pl.BlockSpec((block_b, K, E), lambda i: (i, 0, 0)),
        compiler_params=pltpu.CompilerParams(
            dimension_semantics=("parallel",),
            vmem_limit_bytes=_vmem_budget(block_b, N, E, K, num_heads,
                                          jnp.dtype(x.dtype).itemsize)),
    )(q_stack, mask, x, wkv_bf, bkv2, wo_bf, bo2)


# ------------------------- pure-JAX reference (check) ----------------------- #

def mha_reference(query, x, wq, bq, wkv, bkv, wo, bo, num_heads):
    B, N, E = x.shape
    K = query.shape[0]
    hd = E // num_heads
    scale = 1.0 / math.sqrt(hd)
    qp = query @ wq + bq                                   # (K, E)
    kv = jnp.einsum('bne,ef->bnf', x, wkv) + bkv           # (B, N, 2E)
    kp, vp = kv[..., :E], kv[..., E:]
    qh = qp.reshape(K, num_heads, hd)
    kh = kp.reshape(B, N, num_heads, hd)
    vh = vp.reshape(B, N, num_heads, hd)
    s = jnp.einsum('khd,bnhd->bhkn', qh, kh) * scale
    p = jax.nn.softmax(s, axis=-1)
    oh = jnp.einsum('bhkn,bnhd->bkhd', p, vh)
    return oh.reshape(B, K, E) @ wo + bo


# ----------------------------------- main ----------------------------------- #

if __name__ == "__main__":
    B, N, E = 2, 256, 128          # (B, N, E) input token sequence
    K = 16                         # num_samples
    HEADS = 8                      # module default num_heads=8

    key = jax.random.PRNGKey(0)
    kx, kq, k1, k2, k3, k4, k5, k6 = jax.random.split(key, 8)
    f32 = jnp.float32
    ws = 1.0 / math.sqrt(E)

    x = jax.random.normal(kx, (B, N, E), f32)
    query = jax.random.normal(kq, (K, E), f32)                 # query_embed
    # Weights stored already transposed to (in, out); k/v fused along columns.
    wq = ws * jax.random.normal(k1, (E, E), f32)
    wkv = ws * jax.random.normal(k2, (E, 2 * E), f32)
    wo = ws * jax.random.normal(k3, (E, E), f32)
    bq = 0.02 * jax.random.normal(k4, (E,), f32)
    bkv = 0.02 * jax.random.normal(k5, (2 * E,), f32)
    bo = 0.02 * jax.random.normal(k6, (E,), f32)

    fwd = jax.jit(functools.partial(learnable_sampler, num_heads=HEADS))
    out = fwd(x, query, wq, bq, wkv, bkv, wo, bo)
    jax.block_until_ready(out)

    assert out.shape == (B, K, E)
    assert bool(jnp.all(jnp.isfinite(out)))

    ref = mha_reference(query, x, wq, bq, wkv, bkv, wo, bo, HEADS)
    max_err = float(jnp.max(jnp.abs(out - ref)))
    # bf16 MXU operands with f32 accumulation: a slightly looser tolerance.
    assert max_err < 3e-2, f"kernel/reference mismatch, max abs err = {max_err}"

    print("KERNEL_OK")
</pallas_src>

<mosaic_0001>
module attributes {stable_mosaic.version = 11 : i64} {
  func.func @_sampler_kernel(%arg0: i32, %arg1: memref<128x128xbf16, #tpu.memory_space<vmem>>, %arg2: memref<128x128xf32, #tpu.memory_space<vmem>>, %arg3: memref<1x256x128xf32, #tpu.memory_space<vmem>>, %arg4: memref<128x256xbf16, #tpu.memory_space<vmem>>, %arg5: memref<1x256xf32, #tpu.memory_space<vmem>>, %arg6: memref<128x128xbf16, #tpu.memory_space<vmem>>, %arg7: memref<1x128xf32, #tpu.memory_space<vmem>>, %arg8: memref<1x16x128xf32, #tpu.memory_space<vmem>>) attributes {dimension_semantics = [#tpu.dimension_semantics<parallel>], iteration_bounds = array<i64: 2>, scalar_prefetch = 0 : i64, scratch_operands = 0 : i64, tpu.core_type = #tpu.core_type<tc>, window_params = [{pipeline_mode = #tpu.pipeline_mode<synchronous>, transform_indices = @transform_0, window_bounds = array<i64: 128, 128>}, {pipeline_mode = #tpu.pipeline_mode<synchronous>, transform_indices = @transform_1, window_bounds = array<i64: 128, 128>}, {transform_indices = @transform_2, window_bounds = array<i64: 1, 256, 128>}, {pipeline_mode = #tpu.pipeline_mode<synchronous>, transform_indices = @transform_3, window_bounds = array<i64: 128, 256>}, {pipeline_mode = #tpu.pipeline_mode<synchronous>, transform_indices = @transform_4, window_bounds = array<i64: 1, 256>}, {pipeline_mode = #tpu.pipeline_mode<synchronous>, transform_indices = @transform_5, window_bounds = array<i64: 128, 128>}, {pipeline_mode = #tpu.pipeline_mode<synchronous>, transform_indices = @transform_6, window_bounds = array<i64: 1, 128>}, {transform_indices = @transform_7, window_bounds = array<i64: 1, 16, 128>}]} {
    %c0 = arith.constant 0 : index
    %c0_0 = arith.constant 0 : index
    %c0_1 = arith.constant 0 : index
    %0 = vector.load %arg3[%c0, %c0_0, %c0_1] : memref<1x256x128xf32, #tpu.memory_space<vmem>>, vector<1x256x128xf32>
    %1 = arith.truncf %0 : vector<1x256x128xf32> to vector<1x256x128xbf16>
    %2 = vector.shape_cast %1 : vector<1x256x128xbf16> to vector<256x128xbf16>
    %c0_2 = arith.constant 0 : index
    %c0_3 = arith.constant 0 : index
    %3 = vector.load %arg4[%c0_2, %c0_3] : memref<128x256xbf16, #tpu.memory_space<vmem>>, vector<128x256xbf16>
    %cst = arith.constant dense<0.000000e+00> : vector<256x256xf32>
    %4 = tpu.matmul %2, %3, %cst {dimension_numbers = #tpu.dot_dimension_numbers<[1], [0], [0], [1], [0, 0, 1, 1], [], []>} : vector<256x128xbf16>, vector<128x256xbf16>, vector<256x256xf32> -> vector<256x256xf32>
    %c0_4 = arith.constant 0 : index
    %c0_5 = arith.constant 0 : index
    %5 = vector.load %arg5[%c0_4, %c0_5] : memref<1x256xf32, #tpu.memory_space<vmem>>, vector<1x256xf32>
    %6 = vector.broadcast %5 : vector<1x256xf32> to vector<256x256xf32>
    %7 = arith.addf %4, %6 : vector<256x256xf32>
    %8 = vector.shape_cast %7 : vector<256x256xf32> to vector<1x256x256xf32>
    %c0_6 = arith.constant 0 : index
    %c0_7 = arith.constant 0 : index
    %9 = vector.load %arg1[%c0_6, %c0_7] : memref<128x128xbf16, #tpu.memory_space<vmem>>, vector<128x128xbf16>
    %c0_8 = arith.constant 0 : index
    %c0_9 = arith.constant 0 : index
    %10 = vector.load %arg2[%c0_8, %c0_9] : memref<128x128xf32, #tpu.memory_space<vmem>>, vector<128x128xf32>
    %c0_10 = arith.constant 0 : index
    %c0_11 = arith.constant 0 : index
    %11 = vector.load %arg6[%c0_10, %c0_11] : memref<128x128xbf16, #tpu.memory_space<vmem>>, vector<128x128xbf16>
    %c0_12 = arith.constant 0 : index
    %c0_13 = arith.constant 0 : index
    %12 = vector.load %arg7[%c0_12, %c0_13] : memref<1x128xf32, #tpu.memory_space<vmem>>, vector<1x128xf32>
    %13 = vector.extract_strided_slice %8 {offsets = [0, 0, 0], sizes = [1, 256, 128], strides = [1, 1, 1]} : vector<1x256x256xf32> to vector<1x256x128xf32>
    %14 = vector.shape_cast %13 : vector<1x256x128xf32> to vector<256x128xf32>
    %15 = arith.truncf %14 : vector<256x128xf32> to vector<256x128xbf16>
    %16 = vector.extract_strided_slice %8 {offsets = [0, 0, 128], sizes = [1, 256, 128], strides = [1, 1, 1]} : vector<1x256x256xf32> to vector<1x256x128xf32>
    %17 = vector.shape_cast %16 : vector<1x256x128xf32> to vector<256x128xf32>
    %18 = arith.truncf %17 : vector<256x128xf32> to vector<256x128xbf16>
    %cst_14 = arith.constant dense<0.000000e+00> : vector<128x256xf32>
    %19 = tpu.matmul %9, %15, %cst_14 {dimension_numbers = #tpu.dot_dimension_numbers<[1], [1], [0], [0], [0, 0, 1, 0], [], []>} : vector<128x128xbf16>, vector<256x128xbf16>, vector<128x256xf32> -> vector<128x256xf32>
    %cst_15 = arith.constant dense<0xFF800000> : vector<128xf32>
    %20 = vector.multi_reduction <maximumf>, %19, %cst_15 [1] : vector<128x256xf32> to vector<128xf32>
    %21 = vector.shape_cast %20 : vector<128xf32> to vector<128x1xf32>
    %22 = vector.broadcast %21 : vector<128x1xf32> to vector<128x256xf32>
    %23 = arith.subf %19, %22 : vector<128x256xf32>
    %24 = math.exp %23 : vector<128x256xf32>
    %cst_16 = arith.constant dense<0.000000e+00> : vector<128xf32>
    %25 = vector.multi_reduction <add>, %24, %cst_16 [1] : vector<128x256xf32> to vector<128xf32>
    %26 = vector.shape_cast %25 : vector<128xf32> to vector<128x1xf32>
    %27 = tpu.reciprocal %26 {approx = true} : vector<128x1xf32> -> vector<128x1xf32>
    %28 = vector.broadcast %27 : vector<128x1xf32> to vector<128x256xf32>
    %29 = arith.mulf %24, %28 : vector<128x256xf32>
    %30 = arith.truncf %29 : vector<128x256xf32> to vector<128x256xbf16>
    %cst_17 = arith.constant dense<0.000000e+00> : vector<128x128xf32>
    %31 = tpu.matmul %30, %18, %cst_17 {dimension_numbers = #tpu.dot_dimension_numbers<[1], [0], [0], [1], [0, 0, 1, 1], [], []>} : vector<128x256xbf16>, vector<256x128xbf16>, vector<128x128xf32> -> vector<128x128xf32>
    %32 = arith.mulf %31, %10 : vector<128x128xf32>
    %33 = vector.shape_cast %32 : vector<128x128xf32> to vector<8x16x128xf32>
    %cst_18 = arith.constant dense<0.000000e+00> : vector<16x128xf32>
    %34 = vector.multi_reduction <add>, %33, %cst_18 [0] : vector<8x16x128xf32> to vector<16x128xf32>
    %35 = arith.truncf %34 : vector<16x128xf32> to vector<16x128xbf16>
    %cst_19 = arith.constant dense<0.000000e+00> : vector<16x128xf32>
    %36 = tpu.matmul %35, %11, %cst_19 {dimension_numbers = #tpu.dot_dimension_numbers<[1], [0], [0], [1], [0, 0, 1, 1], [], []>} : vector<16x128xbf16>, vector<128x128xbf16>, vector<16x128xf32> -> vector<16x128xf32>
    %37 = vector.broadcast %12 : vector<1x128xf32> to vector<16x128xf32>
    %38 = arith.addf %36, %37 : vector<16x128xf32>
    %c0_20 = arith.constant 0 : index
    %c0_21 = arith.constant 0 : index
    %c0_22 = arith.constant 0 : index
    %39 = vector.load %arg8[%c0_20, %c0_21, %c0_22] : memref<1x16x128xf32, #tpu.memory_space<vmem>>, vector<1x16x128xf32>
    %40 = vector.shape_cast %39 : vector<1x16x128xf32> to vector<16x128xf32>
    %41 = vector.shape_cast %38 : vector<16x128xf32> to vector<1x16x128xf32>
    tpu.vector_store %arg8[%c0_20, %c0_21, %c0_22], %41 {strides = array<i32>} : memref<1x16x128xf32, #tpu.memory_space<vmem>>, vector<1x16x128xf32>,
    return
  }
  func.func @transform_0(%arg0: i32) -> (i32, i32) {
    %c0_i32 = arith.constant 0 : i32
    %c0_i32_0 = arith.constant 0 : i32
    %c0_i32_1 = arith.constant 0 : i32
    return %c0_i32, %c0_i32_0 : i32, i32
  }
  func.func @transform_1(%arg0: i32) -> (i32, i32) {
    %c0_i32 = arith.constant 0 : i32
    %c0_i32_0 = arith.constant 0 : i32
    %c0_i32_1 = arith.constant 0 : i32
    return %c0_i32, %c0_i32_0 : i32, i32
  }
  func.func @transform_2(%arg0: i32) -> (i32, i32, i32) {
    %c0_i32 = arith.constant 0 : i32
    %c0_i32_0 = arith.constant 0 : i32
    %c0_i32_1 = arith.constant 0 : i32
    return %arg0, %c0_i32, %c0_i32_0 : i32, i32, i32
  }
  func.func @transform_3(%arg0: i32) -> (i32, i32) {
    %c0_i32 = arith.constant 0 : i32
    %c0_i32_0 = arith.constant 0 : i32
    %c0_i32_1 = arith.constant 0 : i32
    return %c0_i32, %c0_i32_0 : i32, i32
  }
  func.func @transform_4(%arg0: i32) -> (i32, i32) {
    %c0_i32 = arith.constant 0 : i32
    %c0_i32_0 = arith.constant 0 : i32
    %c0_i32_1 = arith.constant 0 : i32
    return %c0_i32, %c0_i32_0 : i32, i32
  }
  func.func @transform_5(%arg0: i32) -> (i32, i32) {
    %c0_i32 = arith.constant 0 : i32
    %c0_i32_0 = arith.constant 0 : i32
    %c0_i32_1 = arith.constant 0 : i32
    return %c0_i32, %c0_i32_0 : i32, i32
  }
  func.func @transform_6(%arg0: i32) -> (i32, i32) {
    %c0_i32 = arith.constant 0 : i32
    %c0_i32_0 = arith.constant 0 : i32
    %c0_i32_1 = arith.constant 0 : i32
    return %c0_i32, %c0_i32_0 : i32, i32
  }
  func.func @transform_7(%arg0: i32) -> (i32, i32, i32) {
    %c0_i32 = arith.constant 0 : i32
    %c0_i32_0 = arith.constant 0 : i32
    %c0_i32_1 = arith.constant 0 : i32
    return %arg0, %c0_i32, %c0_i32_0 : i32, i32, i32
  }
}

</mosaic_0001>

<llo_original>
// kernel: learnable_sampler.1
$region0: #{learnable_sampler.1}
  #allocation0 [shape = 'u32[]', space=smem, size = 0x4, offset = 0x4, fixed_abs, tag = 'smem constant byte address 0x4 - core index']
  #allocation1 [shape = 'u32[72,128]{1,0:T(1,128)}', space=vmem, size = 0x9000, scoped, tag = 'internal scratch']
  %s0 = inlined_call_operand.vmem [shape: bf16[128,128], index: 0, kind: input, shape index: {}]
  %s1 = inlined_call_operand.vmem [shape: f32[128,128], index: 1, kind: input, shape index: {}]
  %s2 = inlined_call_operand.vmem [shape: f32[2,256,128], index: 2, kind: input, shape index: {}]
  %s3 = inlined_call_operand.vmem [shape: bf16[128,256], index: 3, kind: input, shape index: {}]
  %s4 = inlined_call_operand.vmem [shape: f32[1,256], index: 4, kind: input, shape index: {}]
  %s5 = inlined_call_operand.vmem [shape: bf16[128,128], index: 5, kind: input, shape index: {}]
  %s6 = inlined_call_operand.vmem [shape: f32[1,128], index: 6, kind: input, shape index: {}]
  %s7 = inlined_call_operand.hbm [shape: f32[2,16,128], index: 7, kind: output, shape index: {}]
  %s8 = sld [smem:[#allocation0]]
  $region61: #{learnable_sampler.1} parent=0
    _
  %s10 = ssub.s32 1, %s8
  %s11 = scalar_select 0, %s10, %s8
  $region1: #{learnable_sampler.1} parent=0
    #allocation2 [shape = 'u8[16384]{0}', space=vmem, size = 0x4000, scoped, tag = 'output window, operand 0']
    #allocation3 [shape = 's32[2]{0}', space=sflag, size = 0x8, scoped, tag = 'scoped memory for learnable_sampler.1']
    %12 = vsyncpa [#allocation3], 0
    %s13 = scalar_lea.sflag [#allocation3], 1
    %14 = vsyncpa %s13, 0
    loop: start=0, step=1, limit=4
    $region2: #{learnable_sampler.1} parent=1 // loop_pre_header
      _
    $region3: #{learnable_sampler.1} parent=1 // loop_header
      %s16 = sphi 0, %s20
      %p17 = scmp.ge.s32.totalorder %s16, 4
      %s24 = sphi 0, %s24
      %s26 = sphi 0, %s24
      %s27 = sphi 0, %s26
      %s41 = sphi 0, %s27
      %s45 = sphi 0, %s45
      %s47 = sphi 0, %s45
      %s48 = sphi 0, %s47
      %s62 = sphi 0, %s48
      %s68 = sphi 0, %s70
      %s71 = sphi 0, %s68
      %s72 = sphi 0, %s71
      %s88 = sphi 0, %s72
      %s92 = sphi 0, %s92
      %s94 = sphi 0, %s92
      %s95 = sphi 0, %s94
      %s109 = sphi 0, %s95
      %s113 = sphi 0, %s113
      %s115 = sphi 0, %s113
      %s116 = sphi 0, %s115
      %s130 = sphi 0, %s116
      %s134 = sphi 0, %s134
      %s136 = sphi 0, %s134
      %s137 = sphi 0, %s136
      %s151 = sphi 0, %s137
      %s155 = sphi 0, %s155
      %s157 = sphi 0, %s155
      %s158 = sphi 0, %s157
      %s172 = sphi 0, %s158
      %s178 = sphi 0, %s180
      %s181 = sphi 0, %s178
      %s182 = sphi 0, %s181
      %s198 = sphi 0, %s182
    $region4: #{learnable_sampler.1} parent=1 // loop_header_branch
      %19 = sbr.rel (%p17) target = $region8
    $region5: #{learnable_sampler.1} parent=1 // loop_body
      %s21 = ssub.s32 %s16, 1
      %s22 = ssub.s32 %s16, 2
      %s23 = sadd.s32 %s16, 1
      %s25 = sadd.s32 %s24, 1
      %p28 = scmp.eq.s32.totalorder %s16, 1
      %p29 = scmp.ne.s32.totalorder %s24, %s26
      %p30 = scmp.eq.s32.totalorder %s16, 0
      %p31 = por %p29, %p30
      %p32 = scmp.ne.s32.totalorder %s24, %s26
      %p33 = scmp.eq.s32.totalorder %s21, 1
      %p34 = por %p32, %p33
      %p35 = scmp.ne.s32.totalorder %s26, %s27
      %p36 = scmp.eq.s32.totalorder %s21, 0
      %p37 = por %p35, %p36
      %p38 = scmp.ne.s32.totalorder %s26, %s27
      %p39 = scmp.eq.s32.totalorder %s22, 1
      %p40 = por %p38, %p39
      %p42 = scmp.ne.s32.totalorder %s27, %s41
      %p43 = scmp.eq.s32.totalorder %s22, 0
      %p44 = por %p42, %p43
      %s46 = sadd.s32 %s45, 1
      %p49 = scmp.eq.s32.totalorder %s16, 1
      %p50 = scmp.ne.s32.totalorder %s45, %s47
      %p51 = scmp.eq.s32.totalorder %s16, 0
      %p52 = por %p50, %p51
      %p53 = scmp.ne.s32.totalorder %s45, %s47
      %p54 = scmp.eq.s32.totalorder %s21, 1
      %p55 = por %p53, %p54
      %p56 = scmp.ne.s32.totalorder %s47, %s48
      %p57 = scmp.eq.s32.totalorder %s21, 0
      %p58 = por %p56, %p57
      %p59 = scmp.ne.s32.totalorder %s47, %s48
      %p60 = scmp.eq.s32.totalorder %s22, 1
      %p61 = por %p59, %p60
      %p63 = scmp.ne.s32.totalorder %s48, %s62
      %p64 = scmp.eq.s32.totalorder %s22, 0
      %p65 = por %p63, %p64
      %s66 = ssub.s32 %s16, %s23
      %p67 = scmp.eq.s32.totalorder %s66, 0
      %s69 = sadd.s32 %s68, 1
      %s70 = scalar_select %p67, %s68, %s69
      %p73 = pneg %p67
      %p74 = scmp.eq.s32.totalorder %s16, 1
      %p75 = por %p73, %p74
      %p76 = scmp.ne.s32.totalorder %s68, %s71
      %p77 = scmp.eq.s32.totalorder %s16, 0
      %p78 = por %p76, %p77
      %p79 = scmp.ne.s32.totalorder %s68, %s71
      %p80 = scmp.eq.s32.totalorder %s21, 1
      %p81 = por %p79, %p80
      %p82 = scmp.ne.s32.totalorder %s71, %s72
      %p83 = scmp.eq.s32.totalorder %s21, 0
      %p84 = por %p82, %p83
      %p85 = scmp.ne.s32.totalorder %s71, %s72
      %p86 = scmp.eq.s32.totalorder %s22, 1
      %p87 = por %p85, %p86
      %p89 = scmp.ne.s32.totalorder %s72, %s88
      %p90 = scmp.eq.s32.totalorder %s22, 0
      %p91 = por %p89, %p90
      %s93 = sadd.s32 %s92, 1
      %p96 = scmp.eq.s32.totalorder %s16, 1
      %p97 = scmp.ne.s32.totalorder %s92, %s94
      %p98 = scmp.eq.s32.totalorder %s16, 0
      %p99 = por %p97, %p98
      %p100 = scmp.ne.s32.totalorder %s92, %s94
      %p101 = scmp.eq.s32.totalorder %s21, 1
      %p102 = por %p100, %p101
      %p103 = scmp.ne.s32.totalorder %s94, %s95
      %p104 = scmp.eq.s32.totalorder %s21, 0
      %p105 = por %p103, %p104
      %p106 = scmp.ne.s32.totalorder %s94, %s95
      %p107 = scmp.eq.s32.totalorder %s22, 1
      %p108 = por %p106, %p107
      %p110 = scmp.ne.s32.totalorder %s95, %s109
      %p111 = scmp.eq.s32.totalorder %s22, 0
      %p112 = por %p110, %p111
      %s114 = sadd.s32 %s113, 1
      %p117 = scmp.eq.s32.totalorder %s16, 1
      %p118 = scmp.ne.s32.totalorder %s113, %s115
      %p119 = scmp.eq.s32.totalorder %s16, 0
      %p120 = por %p118, %p119
      %p121 = scmp.ne.s32.totalorder %s113, %s115
      %p122 = scmp.eq.s32.totalorder %s21, 1
      %p123 = por %p121, %p122
      %p124 = scmp.ne.s32.totalorder %s115, %s116
      %p125 = scmp.eq.s32.totalorder %s21, 0
      %p126 = por %p124, %p125
      %p127 = scmp.ne.s32.totalorder %s115, %s116
      %p128 = scmp.eq.s32.totalorder %s22, 1
      %p129 = por %p127, %p128
      %p131 = scmp.ne.s32.totalorder %s116, %s130
      %p132 = scmp.eq.s32.totalorder %s22, 0
      %p133 = por %p131, %p132
      %s135 = sadd.s32 %s134, 1
      %p138 = scmp.eq.s32.totalorder %s16, 1
      %p139 = scmp.ne.s32.totalorder %s134, %s136
      %p140 = scmp.eq.s32.totalorder %s16, 0
      %p141 = por %p139, %p140
      %p142 = scmp.ne.s32.totalorder %s134, %s136
      %p143 = scmp.eq.s32.totalorder %s21, 1
      %p144 = por %p142, %p143
      %p145 = scmp.ne.s32.totalorder %s136, %s137
      %p146 = scmp.eq.s32.totalorder %s21, 0
      %p147 = por %p145, %p146
      %p148 = scmp.ne.s32.totalorder %s136, %s137
      %p149 = scmp.eq.s32.totalorder %s22, 1
      %p150 = por %p148, %p149
      %p152 = scmp.ne.s32.totalorder %s137, %s151
      %p153 = scmp.eq.s32.totalorder %s22, 0
      %p154 = por %p152, %p153
      %s156 = sadd.s32 %s155, 1
      %p159 = scmp.eq.s32.totalorder %s16, 1
      %p160 = scmp.ne.s32.totalorder %s155, %s157
      %p161 = scmp.eq.s32.totalorder %s16, 0
      %p162 = por %p160, %p161
      %p163 = scmp.ne.s32.totalorder %s155, %s157
      %p164 = scmp.eq.s32.totalorder %s21, 1
      %p165 = por %p163, %p164
      %p166 = scmp.ne.s32.totalorder %s157, %s158
      %p167 = scmp.eq.s32.totalorder %s21, 0
      %p168 = por %p166, %p167
      %p169 = scmp.ne.s32.totalorder %s157, %s158
      %p170 = scmp.eq.s32.totalorder %s22, 1
      %p171 = por %p169, %p170
      %p173 = scmp.ne.s32.totalorder %s158, %s172
      %p174 = scmp.eq.s32.totalorder %s22, 0
      %p175 = por %p173, %p174
      %s176 = ssub.s32 %s16, %s23
      %p177 = scmp.eq.s32.totalorder %s176, 0
      %s179 = sadd.s32 %s178, 1
      %s180 = scalar_select %p177, %s178, %s179
      %p183 = pneg %p177
      %p184 = scmp.eq.s32.totalorder %s16, 1
      %p185 = por %p183, %p184
      %p186 = scmp.ne.s32.totalorder %s178, %s181
      %p187 = scmp.eq.s32.totalorder %s16, 0
      %p188 = por %p186, %p187
      %p189 = scmp.ne.s32.totalorder %s178, %s181
      %p190 = scmp.eq.s32.totalorder %s21, 1
      %p191 = por %p189, %p190
      %p192 = scmp.ne.s32.totalorder %s181, %s182
      %p193 = scmp.eq.s32.totalorder %s21, 0
      %p194 = por %p192, %p193
      %p195 = scmp.ne.s32.totalorder %s181, %s182
      %p196 = scmp.eq.s32.totalorder %s22, 1
      %p197 = por %p195, %p196
      %p199 = scmp.ne.s32.totalorder %s182, %s198
      %p200 = scmp.eq.s32.totalorder %s22, 0
      %p201 = por %p199, %p200
      %p202 = scmp.le.s32.totalorder 1, %s16
      %p203 = scmp.lt.s32.totalorder %s16, 3
      %p204 = pnand %p202, %p203
      %p205 = pneg %p204
      // Predicated region
      $region9: #{learnable_sampler.1} parent=5 // pred_check
        _
      $region10: #{learnable_sampler.1} parent=5 // pred_check_branch
        %207 = sbr.rel (%p204) target = $region12
      $region11: #{learnable_sampler.1} parent=5 // pred_region
        %s208 = ssub.s32 %s16, 1
        // Predicated region
        $region13: #{learnable_sampler.1} parent=11 // pred_check
          %p209 = pneg %p37
        $region14: #{learnable_sampler.1} parent=11 // pred_check_branch
          %211 = sbr.rel (%p209) target = $region16
        $region15: #{learnable_sampler.1} parent=11 // pred_region
          _
        $region16: #{learnable_sampler.1} parent=11 // pred_fallthru
          _
        // Predicated region
        $region17: #{learnable_sampler.1} parent=11 // pred_check
          %p212 = pneg %p58
        $region18: #{learnable_sampler.1} parent=11 // pred_check_branch
          %214 = sbr.rel (%p212) target = $region20
        $region19: #{learnable_sampler.1} parent=11 // pred_region
          _
        $region20: #{learnable_sampler.1} parent=11 // pred_fallthru
          _
        // Predicated region
        $region21: #{learnable_sampler.1} parent=11 // pred_check
          %p215 = pneg %p105
        $region22: #{learnable_sampler.1} parent=11 // pred_check_branch
          %217 = sbr.rel (%p215) target = $region24
        $region23: #{learnable_sampler.1} parent=11 // pred_region
          _
        $region24: #{learnable_sampler.1} parent=11 // pred_fallthru
          _
        // Predicated region
        $region25: #{learnable_sampler.1} parent=11 // pred_check
          %p218 = pneg %p126
        $region26: #{learnable_sampler.1} parent=11 // pred_check_branch
          %220 = sbr.rel (%p218) target = $region28
        $region27: #{learnable_sampler.1} parent=11 // pred_region
          _
        $region28: #{learnable_sampler.1} parent=11 // pred_fallthru
          _
        // Predicated region
        $region29: #{learnable_sampler.1} parent=11 // pred_check
          %p221 = pneg %p147
        $region30: #{learnable_sampler.1} parent=11 // pred_check_branch
          %223 = sbr.rel (%p221) target = $region32
        $region31: #{learnable_sampler.1} parent=11 // pred_region
          _
        $region32: #{learnable_sampler.1} parent=11 // pred_fallthru
          _
        // Predicated region
        $region33: #{learnable_sampler.1} parent=11 // pred_check
          %p224 = pneg %p168
        $region34: #{learnable_sampler.1} parent=11 // pred_check_branch
          %226 = sbr.rel (%p224) target = $region36
        $region35: #{learnable_sampler.1} parent=11 // pred_region
          _
        $region36: #{learnable_sampler.1} parent=11 // pred_fallthru
          _
      $region12: #{learnable_sampler.1} parent=5 // pred_fallthru
        _
      %p227 = scmp.lt.s32.totalorder %s16, 2
      // Predicated region
      $region37: #{learnable_sampler.1} parent=5 // pred_check
        %p228 = pneg %p227
      $region38: #{learnable_sampler.1} parent=5 // pred_check_branch
        %230 = sbr.rel (%p228) target = $region40
      $region39: #{learnable_sampler.1} parent=5 // pred_region
        // Predicated region
        $region41: #{learnable_sampler.1} parent=39 // pred_check
          %p231 = pneg %p78
        $region42: #{learnable_sampler.1} parent=39 // pred_check_branch
          %233 = sbr.rel (%p231) target = $region44
        $region43: #{learnable_sampler.1} parent=39 // pred_region
          %p234 = scmp.lt.s32.totalorder %s16, 1
          %s235 = scalar_select %p234, %s16, 1
          %s236 = smul.addr %s235, 32
          %s237 = smul.addr %s236, 8
          %s238 = scalar_lea.vmem %s2, %s237
        $region44: #{learnable_sampler.1} parent=39 // pred_fallthru
          _
      $region40: #{learnable_sampler.1} parent=5 // pred_fallthru
        _
      %p239 = scmp.le.s32.totalorder 1, %s16
      %p240 = scmp.lt.s32.totalorder %s16, 3
      %p241 = pnand %p239, %p240
      %p242 = pneg %p241
      // Predicated region
      $region45: #{learnable_sampler.1} parent=5 // pred_check
        _
      $region46: #{learnable_sampler.1} parent=5 // pred_check_branch
        %244 = sbr.rel (%p241) target = $region48
      $region47: #{learnable_sampler.1} parent=5 // pred_region
        %s245 = ssub.s32 %s16, 1
        %p246 = pneg %p37
        %p247 = pneg %p34
        %p248 = pneg %p58
        %p249 = pneg %p55
        %p250 = scmp.lt.s32.totalorder %s21, 1
        %s251 = scalar_select %p250, %s21, 1
        %s252 = smul.addr %s251, 32
        %s253 = smul.addr %s252, 8
        %s254 = scalar_lea.vmem %s2, %s253
        %p255 = pneg %p84
        %p256 = pneg %p81
        %p257 = pneg %p105
        %p258 = pneg %p102
        %p259 = pneg %p126
        %p260 = pneg %p123
        %p261 = pneg %p147
        %p262 = pneg %p144
        %p263 = pneg %p168
        %p264 = pneg %p165
        %p265 = pneg %p194
        %p266 = pneg %p191
        %s267 = sand.u32 %s181, 1
        %s268 = scalar_lea.sflag [#allocation3], %s267
        %s269 = sand.u32 %s181, 1
        %s270 = smul.addr %s269, 16
        %s271 = scalar_lea.vmem [#allocation2], %s270
        %p272 = scmp.lt.s32.totalorder %s21, 1
        %s273 = scalar_select %p272, %s21, 1
        %s274 = smul.addr %s273, 32
        %s275 = smul.addr %s274, 8
        %s276 = scalar_lea.vmem %s2, %s275
        %v277 = vld [vmem:[%s276] sm:$0xff]
        %v278 = vld [vmem:[%s276 + $0x8] sm:$0xff]
        %v279 = vld [vmem:[%s276 + $0x10] sm:$0xff]
        %v280 = vld [vmem:[%s276 + $0x18] sm:$0xff]
        %v281 = vld [vmem:[%s276 + $0x20] sm:$0xff]
        %v282 = vld [vmem:[%s276 + $0x28] sm:$0xff]
        %v283 = vld [vmem:[%s276 + $0x30] sm:$0xff]
        %v284 = vld [vmem:[%s276 + $0x38] sm:$0xff]
        %v285 = vld [vmem:[%s276 + $0x40] sm:$0xff]
        %v286 = vld [vmem:[%s276 + $0x48] sm:$0xff]
        %v287 = vld [vmem:[%s276 + $0x50] sm:$0xff]
        %v288 = vld [vmem:[%s276 + $0x58] sm:$0xff]
        %v289 = vld [vmem:[%s276 + $0x60] sm:$0xff]
        %v290 = vld [vmem:[%s276 + $0x68] sm:$0xff]
        %v291 = vld [vmem:[%s276 + $0x70] sm:$0xff]
        %v292 = vld [vmem:[%s276 + $0x78] sm:$0xff]
        %v293 = vld [vmem:[%s276 + $0x80] sm:$0xff]
        %v294 = vld [vmem:[%s276 + $0x88] sm:$0xff]
        %v295 = vld [vmem:[%s276 + $0x90] sm:$0xff]
        %v296 = vld [vmem:[%s276 + $0x98] sm:$0xff]
        %v297 = vld [vmem:[%s276 + $0xa0] sm:$0xff]
        %v298 = vld [vmem:[%s276 + $0xa8] sm:$0xff]
        %v299 = vld [vmem:[%s276 + $0xb0] sm:$0xff]
        %v300 = vld [vmem:[%s276 + $0xb8] sm:$0xff]
        %v301 = vld [vmem:[%s276 + $0xc0] sm:$0xff]
        %v302 = vld [vmem:[%s276 + $0xc8] sm:$0xff]
        %v303 = vld [vmem:[%s276 + $0xd0] sm:$0xff]
        %v304 = vld [vmem:[%s276 + $0xd8] sm:$0xff]
        %v305 = vld [vmem:[%s276 + $0xe0] sm:$0xff]
        %v306 = vld [vmem:[%s276 + $0xe8] sm:$0xff]
        %v307 = vld [vmem:[%s276 + $0xf0] sm:$0xff]
        %v308 = vld [vmem:[%s276 + $0xf8] sm:$0xff]
        %v309 = vpack.c.bf16 %v277, %v277
        %v310 = vpack.c.bf16 %v278, %v278
        %v311 = vpack.c.bf16 %v279, %v279
        %v312 = vpack.c.bf16 %v280, %v280
        %v313 = vpack.c.bf16 %v281, %v281
        %v314 = vpack.c.bf16 %v282, %v282
        %v315 = vpack.c.bf16 %v283, %v283
        %v316 = vpack.c.bf16 %v284, %v284
        %v317 = vpack.c.bf16 %v285, %v285
        %v318 = vpack.c.bf16 %v286, %v286
        %v319 = vpack.c.bf16 %v287, %v287
        %v320 = vpack.c.bf16 %v288, %v288
        %v321 = vpack.c.bf16 %v289, %v289
        %v322 = vpack.c.bf16 %v290, %v290
        %v323 = vpack.c.bf16 %v291, %v291
        %v324 = vpack.c.bf16 %v292, %v292
        %v325 = vpack.c.bf16 %v293, %v293
        %v326 = vpack.c.bf16 %v294, %v294
        %v327 = vpack.c.bf16 %v295, %v295
        %v328 = vpack.c.bf16 %v296, %v296
        %v329 = vpack.c.bf16 %v297, %v297
        %v330 = vpack.c.bf16 %v298, %v298
        %v331 = vpack.c.bf16 %v299, %v299
        %v332 = vpack.c.bf16 %v300, %v300
        %v333 = vpack.c.bf16 %v301, %v301
        %v334 = vpack.c.bf16 %v302, %v302
        %v335 = vpack.c.bf16 %v303, %v303
        %v336 = vpack.c.bf16 %v304, %v304
        %v337 = vpack.c.bf16 %v305, %v305
        %v338 = vpack.c.bf16 %v306, %v306
        %v339 = vpack.c.bf16 %v307, %v307
        %v340 = vpack.c.bf16 %v308, %v308
        %v341 = vld [vmem:[%s3] sm:$0xff]
        %v342 = vld [vmem:[%s3 + $0x8] sm:$0xff]
        %v343 = vld [vmem:[%s3 + $0x10] sm:$0xff]
        %v344 = vld [vmem:[%s3 + $0x18] sm:$0xff]
        %v345 = vld [vmem:[%s3 + $0x20] sm:$0xff]
        %v346 = vld [vmem:[%s3 + $0x28] sm:$0xff]
        %v347 = vld [vmem:[%s3 + $0x30] sm:$0xff]
        %v348 = vld [vmem:[%s3 + $0x38] sm:$0xff]
        %v349 = vld [vmem:[%s3 + $0x40] sm:$0xff]
        %v350 = vld [vmem:[%s3 + $0x48] sm:$0xff]
        %v351 = vld [vmem:[%s3 + $0x50] sm:$0xff]
        %v352 = vld [vmem:[%s3 + $0x58] sm:$0xff]
        %v353 = vld [vmem:[%s3 + $0x60] sm:$0xff]
        %v354 = vld [vmem:[%s3 + $0x68] sm:$0xff]
        %v355 = vld [vmem:[%s3 + $0x70] sm:$0xff]
        %v356 = vld [vmem:[%s3 + $0x78] sm:$0xff]
        %v357 = vld [vmem:[%s4] sm:$0x3]
        %v359 = vperm.slane %v357, 0
        %v360 = vperm.slane %v357, 1
        %v395 = vunpack.c.l.b16 %v309
        %v396 = vunpack.c.l.b16 %v310
        %v397 = vunpack.c.l.b16 %v311
        %v398 = vunpack.c.l.b16 %v312
        %v399 = vunpack.c.l.b16 %v313
        %v400 = vunpack.c.l.b16 %v314
        %v401 = vunpack.c.l.b16 %v315
        %v402 = vunpack.c.l.b16 %v316
        %v403 = vunpack.c.l.b16 %v317
        %v404 = vunpack.c.l.b16 %v318
        %v405 = vunpack.c.l.b16 %v319
        %v406 = vunpack.c.l.b16 %v320
        %v407 = vunpack.c.l.b16 %v321
        %v408 = vunpack.c.l.b16 %v322
        %v409 = vunpack.c.l.b16 %v323
        %v410 = vunpack.c.l.b16 %v324
        %v411 = vunpack.c.l.b16 %v325
        %v412 = vunpack.c.l.b16 %v326
        %v413 = vunpack.c.l.b16 %v327
        %v414 = vunpack.c.l.b16 %v328
        %v415 = vunpack.c.l.b16 %v329
        %v416 = vunpack.c.l.b16 %v330
        %v417 = vunpack.c.l.b16 %v331
        %v418 = vunpack.c.l.b16 %v332
        %v419 = vunpack.c.l.b16 %v333
        %v420 = vunpack.c.l.b16 %v334
        %v421 = vunpack.c.l.b16 %v335
        %v422 = vunpack.c.l.b16 %v336
        %v423 = vunpack.c.l.b16 %v337
        %v424 = vunpack.c.l.b16 %v338
        %v425 = vunpack.c.l.b16 %v339
        %v426 = vunpack.c.l.b16 %v340
        %v427 = vpack.c.b16 %v396, %v395
        %v428 = vpack.c.b16 %v398, %v397
        %v429 = vpack.c.b16 %v400, %v399
        %v430 = vpack.c.b16 %v402, %v401
        %v431 = vpack.c.b16 %v404, %v403
        %v432 = vpack.c.b16 %v406, %v405
        %v433 = vpack.c.b16 %v408, %v407
        %v434 = vpack.c.b16 %v410, %v409
        %v435 = vpack.c.b16 %v412, %v411
        %v436 = vpack.c.b16 %v414, %v413
        %v437 = vpack.c.b16 %v416, %v415
        %v438 = vpack.c.b16 %v418, %v417
        %v439 = vpack.c.b16 %v420, %v419
        %v440 = vpack.c.b16 %v422, %v421
        %v441 = vpack.c.b16 %v424, %v423
        %v442 = vpack.c.b16 %v426, %v425
        %v475 = vunpack.c.l.b16 %v341
        %v476 = vunpack.c.h.b16 %v341
        %v477 = vunpack.c.l.b16 %v342
        %v478 = vunpack.c.h.b16 %v342
        %v479 = vunpack.c.l.b16 %v343
        %v480 = vunpack.c.h.b16 %v343
        %v481 = vunpack.c.l.b16 %v344
        %v482 = vunpack.c.h.b16 %v344
        %v483 = vunpack.c.l.b16 %v345
        %v484 = vunpack.c.h.b16 %v345
        %v485 = vunpack.c.l.b16 %v346
        %v486 = vunpack.c.h.b16 %v346
        %v487 = vunpack.c.l.b16 %v347
        %v488 = vunpack.c.h.b16 %v347
        %v489 = vunpack.c.l.b16 %v348
        %v490 = vunpack.c.h.b16 %v348
        %v491 = vunpack.c.l.b16 %v349
        %v492 = vunpack.c.h.b16 %v349
        %v493 = vunpack.c.l.b16 %v350
        %v494 = vunpack.c.h.b16 %v350
        %v495 = vunpack.c.l.b16 %v351
        %v496 = vunpack.c.h.b16 %v351
        %v497 = vunpack.c.l.b16 %v352
        %v498 = vunpack.c.h.b16 %v352
        %v499 = vunpack.c.l.b16 %v353
        %v500 = vunpack.c.h.b16 %v353
        %v501 = vunpack.c.l.b16 %v354
        %v502 = vunpack.c.h.b16 %v354
        %v503 = vunpack.c.l.b16 %v355
        %v504 = vunpack.c.h.b16 %v355
        %v505 = vunpack.c.l.b16 %v356
        %v506 = vunpack.c.h.b16 %v356
        %v507 = vpack.c.b16 %v477, %v475
        %v508 = vpack.c.b16 %v478, %v476
        %v509 = vpack.c.b16 %v481, %v479
        %v510 = vpack.c.b16 %v482, %v480
        %v511 = vpack.c.b16 %v485, %v483
        %v512 = vpack.c.b16 %v486, %v484
        %v513 = vpack.c.b16 %v489, %v487
        %v514 = vpack.c.b16 %v490, %v488
        %v515 = vpack.c.b16 %v493, %v491
        %v516 = vpack.c.b16 %v494, %v492
        %v517 = vpack.c.b16 %v497, %v495
        %v518 = vpack.c.b16 %v498, %v496
        %v519 = vpack.c.b16 %v501, %v499
        %v520 = vpack.c.b16 %v502, %v500
        %v521 = vpack.c.b16 %v505, %v503
        %v522 = vpack.c.b16 %v506, %v504
        %539 = vmatpush.bf16.msra.mxu0 %v521
        %540 = vmatpush.bf16.msra.mxu0 %v519
        %541 = vmatpush.bf16.msra.mxu0 %v517
        %542 = vmatpush.bf16.msra.mxu0 %v515
        %543 = vmatpush.bf16.msra.mxu0 %v513
        %544 = vmatpush.bf16.msra.mxu0 %v511
        %545 = vmatpush.bf16.msra.mxu0 %v509
        %546 = vmatpush.bf16.msra.mxu0 %v507
        %547 = vmatmul.bf16.gmra.mxu0 %v427
        %v548 = vpop.f32.mrf.mxu0
        %v549 = vadd.f32 %v359, %v548
        %v550 = vpop.f32.mrf.mxu0
        %v551 = vadd.f32 %v359, %v550
        %552 = vmatmul.bf16.gmra.mxu0 %v428
        %v553 = vpop.f32.mrf.mxu0
        %v554 = vadd.f32 %v359, %v553
        %v555 = vpop.f32.mrf.mxu0
        %v556 = vadd.f32 %v359, %v555
        %557 = vmatmul.bf16.gmra.mxu0 %v429
        %v558 = vpop.f32.mrf.mxu0
        %v559 = vadd.f32 %v359, %v558
        %v560 = vpop.f32.mrf.mxu0
        %v561 = vadd.f32 %v359, %v560
        %562 = vmatmul.bf16.gmra.mxu0 %v430
        %v563 = vpop.f32.mrf.mxu0
        %v564 = vadd.f32 %v359, %v563
        %v565 = vpop.f32.mrf.mxu0
        %v566 = vadd.f32 %v359, %v565
        %567 = vmatmul.bf16.gmra.mxu0 %v431
        %v568 = vpop.f32.mrf.mxu0
        %v569 = vadd.f32 %v359, %v568
        %v570 = vpop.f32.mrf.mxu0
        %v571 = vadd.f32 %v359, %v570
        %572 = vmatmul.bf16.gmra.mxu0 %v432
        %v573 = vpop.f32.mrf.mxu0
        %v574 = vadd.f32 %v359, %v573
        %v575 = vpop.f32.mrf.mxu0
        %v576 = vadd.f32 %v359, %v575
        %577 = vmatmul.bf16.gmra.mxu0 %v433
        %v578 = vpop.f32.mrf.mxu0
        %v579 = vadd.f32 %v359, %v578
        %v580 = vpop.f32.mrf.mxu0
        %v581 = vadd.f32 %v359, %v580
        %582 = vmatmul.bf16.gmra.mxu0 %v434
        %v583 = vpop.f32.mrf.mxu0
        %v584 = vadd.f32 %v359, %v583
        %v585 = vpop.f32.mrf.mxu0
        %v586 = vadd.f32 %v359, %v585
        %587 = vmatmul.bf16.gmra.mxu0 %v435
        %v588 = vpop.f32.mrf.mxu0
        %v589 = vadd.f32 %v359, %v588
        %v590 = vpop.f32.mrf.mxu0
        %v591 = vadd.f32 %v359, %v590
        %592 = vmatmul.bf16.gmra.mxu0 %v436
        %v593 = vpop.f32.mrf.mxu0
        %v594 = vadd.f32 %v359, %v593
        %v595 = vpop.f32.mrf.mxu0
        %v596 = vadd.f32 %v359, %v595
        %597 = vmatmul.bf16.gmra.mxu0 %v437
        %v598 = vpop.f32.mrf.mxu0
        %v599 = vadd.f32 %v359, %v598
        %v600 = vpop.f32.mrf.mxu0
        %v601 = vadd.f32 %v359, %v600
        %602 = vmatmul.bf16.gmra.mxu0 %v438
        %v603 = vpop.f32.mrf.mxu0
        %v604 = vadd.f32 %v359, %v603
        %v605 = vpop.f32.mrf.mxu0
        %v606 = vadd.f32 %v359, %v605
        %607 = vmatmul.bf16.gmra.mxu0 %v439
        %v608 = vpop.f32.mrf.mxu0
        %v609 = vadd.f32 %v359, %v608
        %v610 = vpop.f32.mrf.mxu0
        %v611 = vadd.f32 %v359, %v610
        %612 = vmatmul.bf16.gmra.mxu0 %v440
        %v613 = vpop.f32.mrf.mxu0
        %v614 = vadd.f32 %v359, %v613
        %v615 = vpop.f32.mrf.mxu0
        %v616 = vadd.f32 %v359, %v615
        %617 = vmatmul.bf16.gmra.mxu0 %v441
        %v618 = vpop.f32.mrf.mxu0
        %v619 = vadd.f32 %v359, %v618
        %v620 = vpop.f32.mrf.mxu0
        %v621 = vadd.f32 %v359, %v620
        %622 = vmatmul.bf16.gmra.mxu0 %v442
        %v623 = vpop.f32.mrf.mxu0
        %v624 = vadd.f32 %v359, %v623
        %v625 = vpop.f32.mrf.mxu0
        %v626 = vadd.f32 %v359, %v625
        %627 = vdwg.mxu0
        %628 = vmatpush.bf16.msra.mxu0 %v522
        %629 = vmatpush.bf16.msra.mxu0 %v520
        %630 = vmatpush.bf16.msra.mxu0 %v518
        %631 = vmatpush.bf16.msra.mxu0 %v516
        %632 = vmatpush.bf16.msra.mxu0 %v514
        %633 = vmatpush.bf16.msra.mxu0 %v512
        %634 = vmatpush.bf16.msra.mxu0 %v510
        %635 = vmatpush.bf16.msra.mxu0 %v508
        %636 = vmatmul.bf16.gmra.mxu0 %v427
        %v637 = vpop.f32.mrf.mxu0
        %v638 = vadd.f32 %v360, %v637
        %v639 = vpop.f32.mrf.mxu0
        %v640 = vadd.f32 %v360, %v639
        %641 = vmatmul.bf16.gmra.mxu0 %v428
        %v642 = vpop.f32.mrf.mxu0
        %v643 = vadd.f32 %v360, %v642
        %v644 = vpop.f32.mrf.mxu0
        %v645 = vadd.f32 %v360, %v644
        %646 = vmatmul.bf16.gmra.mxu0 %v429
        %v647 = vpop.f32.mrf.mxu0
        %v648 = vadd.f32 %v360, %v647
        %v649 = vpop.f32.mrf.mxu0
        %v650 = vadd.f32 %v360, %v649
        %651 = vmatmul.bf16.gmra.mxu0 %v430
        %v652 = vpop.f32.mrf.mxu0
        %v653 = vadd.f32 %v360, %v652
        %v654 = vpop.f32.mrf.mxu0
        %v655 = vadd.f32 %v360, %v654
        %656 = vmatmul.bf16.gmra.mxu0 %v431
        %v657 = vpop.f32.mrf.mxu0
        %v658 = vadd.f32 %v360, %v657
        %v659 = vpop.f32.mrf.mxu0
        %v660 = vadd.f32 %v360, %v659
        %661 = vmatmul.bf16.gmra.mxu0 %v432
        %v662 = vpop.f32.mrf.mxu0
        %v663 = vadd.f32 %v360, %v662
        %v664 = vpop.f32.mrf.mxu0
        %v665 = vadd.f32 %v360, %v664
        %666 = vmatmul.bf16.gmra.mxu0 %v433
        %v667 = vpop.f32.mrf.mxu0
        %v668 = vadd.f32 %v360, %v667
        %v669 = vpop.f32.mrf.mxu0
        %v670 = vadd.f32 %v360, %v669
        %671 = vmatmul.bf16.gmra.mxu0 %v434
        %v672 = vpop.f32.mrf.mxu0
        %v673 = vadd.f32 %v360, %v672
        %v674 = vpop.f32.mrf.mxu0
        %v675 = vadd.f32 %v360, %v674
        %676 = vmatmul.bf16.gmra.mxu0 %v435
        %v677 = vpop.f32.mrf.mxu0
        %v678 = vadd.f32 %v360, %v677
        %v679 = vpop.f32.mrf.mxu0
        %v680 = vadd.f32 %v360, %v679
        %681 = vmatmul.bf16.gmra.mxu0 %v436
        %v682 = vpop.f32.mrf.mxu0
        %v683 = vadd.f32 %v360, %v682
        %v684 = vpop.f32.mrf.mxu0
        %v685 = vadd.f32 %v360, %v684
        %686 = vmatmul.bf16.gmra.mxu0 %v437
        %v687 = vpop.f32.mrf.mxu0
        %v688 = vadd.f32 %v360, %v687
        %v689 = vpop.f32.mrf.mxu0
        %v690 = vadd.f32 %v360, %v689
        %691 = vmatmul.bf16.gmra.mxu0 %v438
        %v692 = vpop.f32.mrf.mxu0
        %v693 = vadd.f32 %v360, %v692
        %v694 = vpop.f32.mrf.mxu0
        %v695 = vadd.f32 %v360, %v694
        %696 = vmatmul.bf16.gmra.mxu0 %v439
        %v697 = vpop.f32.mrf.mxu0
        %v698 = vadd.f32 %v360, %v697
        %v699 = vpop.f32.mrf.mxu0
        %v700 = vadd.f32 %v360, %v699
        %701 = vmatmul.bf16.gmra.mxu0 %v440
        %v702 = vpop.f32.mrf.mxu0
        %v703 = vadd.f32 %v360, %v702
        %v704 = vpop.f32.mrf.mxu0
        %v705 = vadd.f32 %v360, %v704
        %706 = vmatmul.bf16.gmra.mxu0 %v441
        %v707 = vpop.f32.mrf.mxu0
        %v708 = vadd.f32 %v360, %v707
        %v709 = vpop.f32.mrf.mxu0
        %v710 = vadd.f32 %v360, %v709
        %711 = vmatmul.bf16.gmra.mxu0 %v442
        %v712 = vpop.f32.mrf.mxu0
        %v713 = vadd.f32 %v360, %v712
        %v714 = vpop.f32.mrf.mxu0
        %v715 = vadd.f32 %v360, %v714
        %716 = vdwg.mxu0
        %v717 = vld [vmem:[%s0] sm:$0xf]
        %v718 = vld [vmem:[%s0 + $0x4] sm:$0xf]
        %v719 = vld [vmem:[%s0 + $0x8] sm:$0xf]
        %v720 = vld [vmem:[%s0 + $0xc] sm:$0xf]
        %v721 = vld [vmem:[%s0 + $0x10] sm:$0xf]
        %v722 = vld [vmem:[%s0 + $0x14] sm:$0xf]
        %v723 = vld [vmem:[%s0 + $0x18] sm:$0xf]
        %v724 = vld [vmem:[%s0 + $0x1c] sm:$0xf]
        %v725 = vld [vmem:[%s0 + $0x20] sm:$0xf]
        %v726 = vld [vmem:[%s0 + $0x24] sm:$0xf]
        %v727 = vld [vmem:[%s0 + $0x28] sm:$0xf]
        %v728 = vld [vmem:[%s0 + $0x2c] sm:$0xf]
        %v729 = vld [vmem:[%s0 + $0x30] sm:$0xf]
        %v730 = vld [vmem:[%s0 + $0x34] sm:$0xf]
        %v731 = vld [vmem:[%s0 + $0x38] sm:$0xf]
        %v732 = vld [vmem:[%s0 + $0x3c] sm:$0xf]
        %v733 = vld [vmem:[%s1] sm:$0xff]
        %v734 = vld [vmem:[%s1 + $0x8] sm:$0xff]
        %v735 = vld [vmem:[%s1 + $0x10] sm:$0xff]
        %v736 = vld [vmem:[%s1 + $0x18] sm:$0xff]
        %v737 = vld [vmem:[%s1 + $0x20] sm:$0xff]
        %v738 = vld [vmem:[%s1 + $0x28] sm:$0xff]
        %v739 = vld [vmem:[%s1 + $0x30] sm:$0xff]
        %v740 = vld [vmem:[%s1 + $0x38] sm:$0xff]
        %v741 = vld [vmem:[%s1 + $0x40] sm:$0xff]
        %v742 = vld [vmem:[%s1 + $0x48] sm:$0xff]
        %v743 = vld [vmem:[%s1 + $0x50] sm:$0xff]
        %v744 = vld [vmem:[%s1 + $0x58] sm:$0xff]
        %v745 = vld [vmem:[%s1 + $0x60] sm:$0xff]
        %v746 = vld [vmem:[%s1 + $0x68] sm:$0xff]
        %v747 = vld [vmem:[%s1 + $0x70] sm:$0xff]
        %v748 = vld [vmem:[%s1 + $0x78] sm:$0xff]
        %v749 = vld [vmem:[%s5] sm:$0xf]
        %v750 = vld [vmem:[%s5 + $0x4] sm:$0xf]
        %v751 = vld [vmem:[%s5 + $0x8] sm:$0xf]
        %v752 = vld [vmem:[%s5 + $0xc] sm:$0xf]
        %v753 = vld [vmem:[%s5 + $0x10] sm:$0xf]
        %v754 = vld [vmem:[%s5 + $0x14] sm:$0xf]
        %v755 = vld [vmem:[%s5 + $0x18] sm:$0xf]
        %v756 = vld [vmem:[%s5 + $0x1c] sm:$0xf]
        %v757 = vld [vmem:[%s5 + $0x20] sm:$0xf]
        %v758 = vld [vmem:[%s5 + $0x24] sm:$0xf]
        %v759 = vld [vmem:[%s5 + $0x28] sm:$0xf]
        %v760 = vld [vmem:[%s5 + $0x2c] sm:$0xf]
        %v761 = vld [vmem:[%s5 + $0x30] sm:$0xf]
        %v762 = vld [vmem:[%s5 + $0x34] sm:$0xf]
        %v763 = vld [vmem:[%s5 + $0x38] sm:$0xf]
        %v764 = vld [vmem:[%s5 + $0x3c] sm:$0xf]
        %v765 = vld [vmem:[%s6] sm:$0x1]
        %v766 = vpack.c.bf16 %v551, %v549
        %v767 = vpack.c.bf16 %v556, %v554
        %v768 = vpack.c.bf16 %v561, %v559
        %v769 = vpack.c.bf16 %v566, %v564
        %v770 = vpack.c.bf16 %v571, %v569
        %v771 = vpack.c.bf16 %v576, %v574
        %v772 = vpack.c.bf16 %v581, %v579
        %v773 = vpack.c.bf16 %v586, %v584
        %v774 = vpack.c.bf16 %v591, %v589
        %v775 = vpack.c.bf16 %v596, %v594
        %v776 = vpack.c.bf16 %v601, %v599
        %v777 = vpack.c.bf16 %v606, %v604
        %v778 = vpack.c.bf16 %v611, %v609
        %v779 = vpack.c.bf16 %v616, %v614
        %v780 = vpack.c.bf16 %v621, %v619
        %v781 = vpack.c.bf16 %v626, %v624
        %v782 = vpack.c.bf16 %v640, %v638
        %v783 = vpack.c.bf16 %v645, %v643
        %v784 = vpack.c.bf16 %v650, %v648
        %v785 = vpack.c.bf16 %v655, %v653
        %v786 = vpack.c.bf16 %v660, %v658
        %v787 = vpack.c.bf16 %v665, %v663
        %v788 = vpack.c.bf16 %v670, %v668
        %v789 = vpack.c.bf16 %v675, %v673
        %v790 = vpack.c.bf16 %v680, %v678
        %v791 = vpack.c.bf16 %v685, %v683
        %v792 = vpack.c.bf16 %v690, %v688
        %v793 = vpack.c.bf16 %v695, %v693
        %v794 = vpack.c.bf16 %v700, %v698
        %v795 = vpack.c.bf16 %v705, %v703
        %v796 = vpack.c.bf16 %v710, %v708
        %v797 = vpack.c.bf16 %v715, %v713
        %v814 = vunpack.c.l.b16 %v717
        %v815 = vunpack.c.l.b16 %v718
        %v816 = vunpack.c.l.b16 %v719
        %v817 = vunpack.c.l.b16 %v720
        %v818 = vunpack.c.l.b16 %v721
        %v819 = vunpack.c.l.b16 %v722
        %v820 = vunpack.c.l.b16 %v723
        %v821 = vunpack.c.l.b16 %v724
        %v822 = vunpack.c.l.b16 %v725
        %v823 = vunpack.c.l.b16 %v726
        %v824 = vunpack.c.l.b16 %v727
        %v825 = vunpack.c.l.b16 %v728
        %v826 = vunpack.c.l.b16 %v729
        %v827 = vunpack.c.l.b16 %v730
        %v828 = vunpack.c.l.b16 %v731
        %v829 = vunpack.c.l.b16 %v732
        %v830 = vpack.c.b16 %v815, %v814
        %v831 = vpack.c.b16 %v817, %v816
        %v832 = vpack.c.b16 %v819, %v818
        %v833 = vpack.c.b16 %v821, %v820
        %v834 = vpack.c.b16 %v823, %v822
        %v835 = vpack.c.b16 %v825, %v824
        %v836 = vpack.c.b16 %v827, %v826
        %v837 = vpack.c.b16 %v829, %v828
        %846 = vmatpush.bf16.xpose.msra.mxu0 %v773
        %847 = vmatpush.bf16.xpose.msra.mxu0 %v772
        %848 = vmatpush.bf16.xpose.msra.mxu0 %v771
        %849 = vmatpush.bf16.xpose.msra.mxu0 %v770
        %850 = vmatpush.bf16.xpose.msra.mxu0 %v769
        %851 = vmatpush.bf16.xpose.msra.mxu0 %v768
        %852 = vmatpush.bf16.xpose.msra.mxu0 %v767
        %853 = vmatpush.bf16.xpose.msra.mxu0 %v766
        %854 = vmatmul.bf16.gmra.mxu0 %v830
        %v855 = vpop.f32.mrf.mxu0
        %v856 = vadd.f32 0.0, %v855
        %v857 = vpop.f32.mrf.mxu0
        %v858 = vadd.f32 0.0, %v857
        %859 = vmatmul.bf16.gmra.mxu0 %v831
        %v860 = vpop.f32.mrf.mxu0
        %v861 = vadd.f32 0.0, %v860
        %v862 = vpop.f32.mrf.mxu0
        %v863 = vadd.f32 0.0, %v862
        %864 = vmatmul.bf16.gmra.mxu0 %v832
        %v865 = vpop.f32.mrf.mxu0
        %v866 = vadd.f32 0.0, %v865
        %v867 = vpop.f32.mrf.mxu0
        %v868 = vadd.f32 0.0, %v867
        %869 = vmatmul.bf16.gmra.mxu0 %v833
        %v870 = vpop.f32.mrf.mxu0
        %v871 = vadd.f32 0.0, %v870
        %v872 = vpop.f32.mrf.mxu0
        %v873 = vadd.f32 0.0, %v872
        %874 = vmatmul.bf16.gmra.mxu0 %v834
        %v875 = vpop.f32.mrf.mxu0
        %v876 = vadd.f32 0.0, %v875
        %v877 = vpop.f32.mrf.mxu0
        %v878 = vadd.f32 0.0, %v877
        %879 = vmatmul.bf16.gmra.mxu0 %v835
        %v880 = vpop.f32.mrf.mxu0
        %v881 = vadd.f32 0.0, %v880
        %v882 = vpop.f32.mrf.mxu0
        %v883 = vadd.f32 0.0, %v882
        %884 = vmatmul.bf16.gmra.mxu0 %v836
        %v885 = vpop.f32.mrf.mxu0
        %v886 = vadd.f32 0.0, %v885
        %v887 = vpop.f32.mrf.mxu0
        %v888 = vadd.f32 0.0, %v887
        %889 = vmatmul.bf16.gmra.mxu0 %v837
        %v890 = vpop.f32.mrf.mxu0
        %v891 = vadd.f32 0.0, %v890
        %v892 = vpop.f32.mrf.mxu0
        %v893 = vadd.f32 0.0, %v892
        %894 = vdwg.mxu0
        %895 = vmatpush.bf16.xpose.msra.mxu0 %v781
        %896 = vmatpush.bf16.xpose.msra.mxu0 %v780
        %897 = vmatpush.bf16.xpose.msra.mxu0 %v779
        %898 = vmatpush.bf16.xpose.msra.mxu0 %v778
        %899 = vmatpush.bf16.xpose.msra.mxu0 %v777
        %900 = vmatpush.bf16.xpose.msra.mxu0 %v776
        %901 = vmatpush.bf16.xpose.msra.mxu0 %v775
        %902 = vmatpush.bf16.xpose.msra.mxu0 %v774
        %903 = vmatmul.bf16.gmra.mxu0 %v830
        %v904 = vpop.f32.mrf.mxu0
        %v905 = vadd.f32 0.0, %v904
        %v906 = vpop.f32.mrf.mxu0
        %v907 = vadd.f32 0.0, %v906
        %908 = vmatmul.bf16.gmra.mxu0 %v831
        %v909 = vpop.f32.mrf.mxu0
        %v910 = vadd.f32 0.0, %v909
        %v911 = vpop.f32.mrf.mxu0
        %v912 = vadd.f32 0.0, %v911
        %913 = vmatmul.bf16.gmra.mxu0 %v832
        %v914 = vpop.f32.mrf.mxu0
        %v915 = vadd.f32 0.0, %v914
        %v916 = vpop.f32.mrf.mxu0
        %v917 = vadd.f32 0.0, %v916
        %918 = vmatmul.bf16.gmra.mxu0 %v833
        %v919 = vpop.f32.mrf.mxu0
        %v920 = vadd.f32 0.0, %v919
        %v921 = vpop.f32.mrf.mxu0
        %v922 = vadd.f32 0.0, %v921
        %923 = vmatmul.bf16.gmra.mxu0 %v834
        %v924 = vpop.f32.mrf.mxu0
        %v925 = vadd.f32 0.0, %v924
        %v926 = vpop.f32.mrf.mxu0
        %v927 = vadd.f32 0.0, %v926
        %928 = vmatmul.bf16.gmra.mxu0 %v835
        %v929 = vpop.f32.mrf.mxu0
        %v930 = vadd.f32 0.0, %v929
        %v931 = vpop.f32.mrf.mxu0
        %v932 = vadd.f32 0.0, %v931
        %933 = vmatmul.bf16.gmra.mxu0 %v836
        %v934 = vpop.f32.mrf.mxu0
        %v935 = vadd.f32 0.0, %v934
        %v936 = vpop.f32.mrf.mxu0
        %v937 = vadd.f32 0.0, %v936
        %938 = vmatmul.bf16.gmra.mxu0 %v837
        %v939 = vpop.f32.mrf.mxu0
        %v940 = vadd.f32 0.0, %v939
        %v941 = vpop.f32.mrf.mxu0
        %v942 = vadd.f32 0.0, %v941
        %943 = vdwg.mxu0
        %v944 = vmax.f32 %v856, %v905
        %945 = vmax.xlane.f32.xlu0 %v944
        %v946 = vpop.xlane.xlu0 %945
        %v947 = vmax.f32 %v858, %v907
        %948 = vmax.xlane.f32.xlu0 %v947
        %v949 = vpop.xlane.xlu0 %948
        %v950 = vmax.f32 %v861, %v910
        %951 = vmax.xlane.f32.xlu0 %v950
        %v952 = vpop.xlane.xlu0 %951
        %v953 = vmax.f32 %v863, %v912
        %954 = vmax.xlane.f32.xlu0 %v953
        %v955 = vpop.xlane.xlu0 %954
        %v956 = vmax.f32 %v866, %v915
        %957 = vmax.xlane.f32.xlu0 %v956
        %v958 = vpop.xlane.xlu0 %957
        %v959 = vmax.f32 %v868, %v917
        %960 = vmax.xlane.f32.xlu0 %v959
        %v961 = vpop.xlane.xlu0 %960
        %v962 = vmax.f32 %v871, %v920
        %963 = vmax.xlane.f32.xlu0 %v962
        %v964 = vpop.xlane.xlu0 %963
        %v965 = vmax.f32 %v873, %v922
        %966 = vmax.xlane.f32.xlu0 %v965
        %v967 = vpop.xlane.xlu0 %966
        %v968 = vmax.f32 %v876, %v925
        %969 = vmax.xlane.f32.xlu0 %v968
        %v970 = vpop.xlane.xlu0 %969
        %v971 = vmax.f32 %v878, %v927
        %972 = vmax.xlane.f32.xlu0 %v971
        %v973 = vpop.xlane.xlu0 %972
        %v974 = vmax.f32 %v881, %v930
        %975 = vmax.xlane.f32.xlu0 %v974
        %v976 = vpop.xlane.xlu0 %975
        %v977 = vmax.f32 %v883, %v932
        %978 = vmax.xlane.f32.xlu0 %v977
        %v979 = vpop.xlane.xlu0 %978
        %v980 = vmax.f32 %v886, %v935
        %981 = vmax.xlane.f32.xlu0 %v980
        %v982 = vpop.xlane.xlu0 %981
        %v983 = vmax.f32 %v888, %v937
        %984 = vmax.xlane.f32.xlu0 %v983
        %v985 = vpop.xlane.xlu0 %984
        %v986 = vmax.f32 %v891, %v940
        %987 = vmax.xlane.f32.xlu0 %v986
        %v988 = vpop.xlane.xlu0 %987
        %v989 = vmax.f32 %v893, %v942
        %990 = vmax.xlane.f32.xlu0 %v989
        %v991 = vpop.xlane.xlu0 %990
        %v992 = vsub.f32 %v856, %v946
        %v993 = vsub.f32 %v905, %v946
        %v994 = vsub.f32 %v858, %v949
        %v995 = vsub.f32 %v907, %v949
        %v996 = vsub.f32 %v861, %v952
        %v997 = vsub.f32 %v910, %v952
        %v998 = vsub.f32 %v863, %v955
        %v999 = vsub.f32 %v912, %v955
        %v1000 = vsub.f32 %v866, %v958
        %v1001 = vsub.f32 %v915, %v958
        %v1002 = vsub.f32 %v868, %v961
        %v1003 = vsub.f32 %v917, %v961
        %v1004 = vsub.f32 %v871, %v964
        %v1005 = vsub.f32 %v920, %v964
        %v1006 = vsub.f32 %v873, %v967
        %v1007 = vsub.f32 %v922, %v967
        %v1008 = vsub.f32 %v876, %v970
        %v1009 = vsub.f32 %v925, %v970
        %v1010 = vsub.f32 %v878, %v973
        %v1011 = vsub.f32 %v927, %v973
        %v1012 = vsub.f32 %v881, %v976
        %v1013 = vsub.f32 %v930, %v976
        %v1014 = vsub.f32 %v883, %v979
        %v1015 = vsub.f32 %v932, %v979
        %v1016 = vsub.f32 %v886, %v982
        %v1017 = vsub.f32 %v935, %v982
        %v1018 = vsub.f32 %v888, %v985
        %v1019 = vsub.f32 %v937, %v985
        %v1020 = vsub.f32 %v891, %v988
        %v1021 = vsub.f32 %v940, %v988
        %v1022 = vsub.f32 %v893, %v991
        %v1023 = vsub.f32 %v942, %v991
        %v1024 = vmul.f32 %v992, 1.442695
        %v1025 = vpow.pop %v1024
        %v1026 = vmul.f32 %v993, 1.442695
        %v1027 = vpow.pop %v1026
        %v1028 = vmul.f32 %v994, 1.442695
        %v1029 = vpow.pop %v1028
        %v1030 = vmul.f32 %v995, 1.442695
        %v1031 = vpow.pop %v1030
        %v1032 = vmul.f32 %v996, 1.442695
        %v1033 = vpow.pop %v1032
        %v1034 = vmul.f32 %v997, 1.442695
        %v1035 = vpow.pop %v1034
        %v1036 = vmul.f32 %v998, 1.442695
        %v1037 = vpow.pop %v1036
        %v1038 = vmul.f32 %v999, 1.442695
        %v1039 = vpow.pop %v1038
        %v1040 = vmul.f32 %v1000, 1.442695
        %v1041 = vpow.pop %v1040
        %v1042 = vmul.f32 %v1001, 1.442695
        %v1043 = vpow.pop %v1042
        %v1044 = vmul.f32 %v1002, 1.442695
        %v1045 = vpow.pop %v1044
        %v1046 = vmul.f32 %v1003, 1.442695
        %v1047 = vpow.pop %v1046
        %v1048 = vmul.f32 %v1004, 1.442695
        %v1049 = vpow.pop %v1048
        %v1050 = vmul.f32 %v1005, 1.442695
        %v1051 = vpow.pop %v1050
        %v1052 = vmul.f32 %v1006, 1.442695
        %v1053 = vpow.pop %v1052
        %v1054 = vmul.f32 %v1007, 1.442695
        %v1055 = vpow.pop %v1054
        %v1056 = vmul.f32 %v1008, 1.442695
        %v1057 = vpow.pop %v1056
        %v1058 = vmul.f32 %v1009, 1.442695
        %v1059 = vpow.pop %v1058
        %v1060 = vmul.f32 %v1010, 1.442695
        %v1061 = vpow.pop %v1060
        %v1062 = vmul.f32 %v1011, 1.442695
        %v1063 = vpow.pop %v1062
        %v1064 = vmul.f32 %v1012, 1.442695
        %v1065 = vpow.pop %v1064
        %v1066 = vmul.f32 %v1013, 1.442695
        %v1067 = vpow.pop %v1066
        %v1068 = vmul.f32 %v1014, 1.442695
        %v1069 = vpow.pop %v1068
        %v1070 = vmul.f32 %v1015, 1.442695
        %v1071 = vpow.pop %v1070
        %v1072 = vmul.f32 %v1016, 1.442695
        %v1073 = vpow.pop %v1072
        %v1074 = vmul.f32 %v1017, 1.442695
        %v1075 = vpow.pop %v1074
        %v1076 = vmul.f32 %v1018, 1.442695
        %v1077 = vpow.pop %v1076
        %v1078 = vmul.f32 %v1019, 1.442695
        %v1079 = vpow.pop %v1078
        %v1080 = vmul.f32 %v1020, 1.442695
        %v1081 = vpow.pop %v1080
        %v1082 = vmul.f32 %v1021, 1.442695
        %v1083 = vpow.pop %v1082
        %v1084 = vmul.f32 %v1022, 1.442695
        %v1085 = vpow.pop %v1084
        %v1086 = vmul.f32 %v1023, 1.442695
        %v1087 = vpow.pop %v1086
        %v1088 = vadd.f32 %v1025, %v1027
        %1089 = vadd.xlane.f32.xlu0 %v1088
        %v1090 = vpop.xlane.xlu0 %1089
        %v1091 = vadd.f32 %v1029, %v1031
        %1092 = vadd.xlane.f32.xlu0 %v1091
        %v1093 = vpop.xlane.xlu0 %1092
        %v1094 = vadd.f32 %v1033, %v1035
        %1095 = vadd.xlane.f32.xlu0 %v1094
        %v1096 = vpop.xlane.xlu0 %1095
        %v1097 = vadd.f32 %v1037, %v1039
        %1098 = vadd.xlane.f32.xlu0 %v1097
        %v1099 = vpop.xlane.xlu0 %1098
        %v1100 = vadd.f32 %v1041, %v1043
        %1101 = vadd.xlane.f32.xlu0 %v1100
        %v1102 = vpop.xlane.xlu0 %1101
        %v1103 = vadd.f32 %v1045, %v1047
        %1104 = vadd.xlane.f32.xlu0 %v1103
        %v1105 = vpop.xlane.xlu0 %1104
        %v1106 = vadd.f32 %v1049, %v1051
        %1107 = vadd.xlane.f32.xlu0 %v1106
        %v1108 = vpop.xlane.xlu0 %1107
        %v1109 = vadd.f32 %v1053, %v1055
        %1110 = vadd.xlane.f32.xlu0 %v1109
        %v1111 = vpop.xlane.xlu0 %1110
        %v1112 = vadd.f32 %v1057, %v1059
        %1113 = vadd.xlane.f32.xlu0 %v1112
        %v1114 = vpop.xlane.xlu0 %1113
        %v1115 = vadd.f32 %v1061, %v1063
        %1116 = vadd.xlane.f32.xlu0 %v1115
        %v1117 = vpop.xlane.xlu0 %1116
        %v1118 = vadd.f32 %v1065, %v1067
        %1119 = vadd.xlane.f32.xlu0 %v1118
        %v1120 = vpop.xlane.xlu0 %1119
        %v1121 = vadd.f32 %v1069, %v1071
        %1122 = vadd.xlane.f32.xlu0 %v1121
        %v1123 = vpop.xlane.xlu0 %1122
        %v1124 = vadd.f32 %v1073, %v1075
        %1125 = vadd.xlane.f32.xlu0 %v1124
        %v1126 = vpop.xlane.xlu0 %1125
        %v1127 = vadd.f32 %v1077, %v1079
        %1128 = vadd.xlane.f32.xlu0 %v1127
        %v1129 = vpop.xlane.xlu0 %1128
        %v1130 = vadd.f32 %v1081, %v1083
        %1131 = vadd.xlane.f32.xlu0 %v1130
        %v1132 = vpop.xlane.xlu0 %1131
        %v1133 = vadd.f32 %v1085, %v1087
        %1134 = vadd.xlane.f32.xlu0 %v1133
        %v1135 = vpop.xlane.xlu0 %1134
        %v1136 = vrcp.pop %v1090
        %v1137 = vrcp.pop %v1093
        %v1138 = vrcp.pop %v1096
        %v1139 = vrcp.pop %v1099
        %v1140 = vrcp.pop %v1102
        %v1141 = vrcp.pop %v1105
        %v1142 = vrcp.pop %v1108
        %v1143 = vrcp.pop %v1111
        %v1144 = vrcp.pop %v1114
        %v1145 = vrcp.pop %v1117
        %v1146 = vrcp.pop %v1120
        %v1147 = vrcp.pop %v1123
        %v1148 = vrcp.pop %v1126
        %v1149 = vrcp.pop %v1129
        %v1150 = vrcp.pop %v1132
        %v1151 = vrcp.pop %v1135
        %v1152 = vmul.f32 %v1025, %v1136
        %v1153 = vmul.f32 %v1027, %v1136
        %v1154 = vmul.f32 %v1029, %v1137
        %v1155 = vmul.f32 %v1031, %v1137
        %v1156 = vmul.f32 %v1033, %v1138
        %v1157 = vmul.f32 %v1035, %v1138
        %v1158 = vmul.f32 %v1037, %v1139
        %v1159 = vmul.f32 %v1039, %v1139
        %v1160 = vmul.f32 %v1041, %v1140
        %v1161 = vmul.f32 %v1043, %v1140
        %v1162 = vmul.f32 %v1045, %v1141
        %v1163 = vmul.f32 %v1047, %v1141
        %v1164 = vmul.f32 %v1049, %v1142
        %v1165 = vmul.f32 %v1051, %v1142
        %v1166 = vmul.f32 %v1053, %v1143
        %v1167 = vmul.f32 %v1055, %v1143
        %v1168 = vmul.f32 %v1057, %v1144
        %v1169 = vmul.f32 %v1059, %v1144
        %v1170 = vmul.f32 %v1061, %v1145
        %v1171 = vmul.f32 %v1063, %v1145
        %v1172 = vmul.f32 %v1065, %v1146
        %v1173 = vmul.f32 %v1067, %v1146
        %v1174 = vmul.f32 %v1069, %v1147
        %v1175 = vmul.f32 %v1071, %v1147
        %v1176 = vmul.f32 %v1073, %v1148
        %v1177 = vmul.f32 %v1075, %v1148
        %v1178 = vmul.f32 %v1077, %v1149
        %v1179 = vmul.f32 %v1079, %v1149
        %v1180 = vmul.f32 %v1081, %v1150
        %v1181 = vmul.f32 %v1083, %v1150
        %v1182 = vmul.f32 %v1085, %v1151
        %v1183 = vmul.f32 %v1087, %v1151
        %v1184 = vpack.c.bf16 %v1154, %v1152
        %v1185 = vpack.c.bf16 %v1155, %v1153
        %v1186 = vpack.c.bf16 %v1158, %v1156
        %v1187 = vpack.c.bf16 %v1159, %v1157
        %v1188 = vpack.c.bf16 %v1162, %v1160
        %v1189 = vpack.c.bf16 %v1163, %v1161
        %v1190 = vpack.c.bf16 %v1166, %v1164
        %v1191 = vpack.c.bf16 %v1167, %v1165
        %v1192 = vpack.c.bf16 %v1170, %v1168
        %v1193 = vpack.c.bf16 %v1171, %v1169
        %v1194 = vpack.c.bf16 %v1174, %v1172
        %v1195 = vpack.c.bf16 %v1175, %v1173
        %v1196 = vpack.c.bf16 %v1178, %v1176
        %v1197 = vpack.c.bf16 %v1179, %v1177
        %v1198 = vpack.c.bf16 %v1182, %v1180
        %v1199 = vpack.c.bf16 %v1183, %v1181
        %1200 = vmatpush.bf16.msra.mxu0 %v789
        %1201 = vmatpush.bf16.msra.mxu0 %v788
        %1202 = vmatpush.bf16.msra.mxu0 %v787
        %1203 = vmatpush.bf16.msra.mxu0 %v786
        %1204 = vmatpush.bf16.msra.mxu0 %v785
        %1205 = vmatpush.bf16.msra.mxu0 %v784
        %1206 = vmatpush.bf16.msra.mxu0 %v783
        %1207 = vmatpush.bf16.msra.mxu0 %v782
        %1208 = vmatmul.bf16.gmra.mxu0 %v1184
        %v1209 = vpop.f32.mrf.mxu0
        %v1210 = vadd.f32 0.0, %v1209
        %v1211 = vpop.f32.mrf.mxu0
        %v1212 = vadd.f32 0.0, %v1211
        %1213 = vmatmul.bf16.gmra.mxu0 %v1186
        %v1214 = vpop.f32.mrf.mxu0
        %v1215 = vadd.f32 0.0, %v1214
        %v1216 = vpop.f32.mrf.mxu0
        %v1217 = vadd.f32 0.0, %v1216
        %1218 = vmatmul.bf16.gmra.mxu0 %v1188
        %v1219 = vpop.f32.mrf.mxu0
        %v1220 = vadd.f32 0.0, %v1219
        %v1221 = vpop.f32.mrf.mxu0
        %v1222 = vadd.f32 0.0, %v1221
        %1223 = vmatmul.bf16.gmra.mxu0 %v1190
        %v1224 = vpop.f32.mrf.mxu0
        %v1225 = vadd.f32 0.0, %v1224
        %v1226 = vpop.f32.mrf.mxu0
        %v1227 = vadd.f32 0.0, %v1226
        %1228 = vmatmul.bf16.gmra.mxu0 %v1192
        %v1229 = vpop.f32.mrf.mxu0
        %v1230 = vadd.f32 0.0, %v1229
        %v1231 = vpop.f32.mrf.mxu0
        %v1232 = vadd.f32 0.0, %v1231
        %1233 = vmatmul.bf16.gmra.mxu0 %v1194
        %v1234 = vpop.f32.mrf.mxu0
        %v1235 = vadd.f32 0.0, %v1234
        %v1236 = vpop.f32.mrf.mxu0
        %v1237 = vadd.f32 0.0, %v1236
        %1238 = vmatmul.bf16.gmra.mxu0 %v1196
        %v1239 = vpop.f32.mrf.mxu0
        %v1240 = vadd.f32 0.0, %v1239
        %v1241 = vpop.f32.mrf.mxu0
        %v1242 = vadd.f32 0.0, %v1241
        %1243 = vmatmul.bf16.gmra.mxu0 %v1198
        %v1244 = vpop.f32.mrf.mxu0
        %v1245 = vadd.f32 0.0, %v1244
        %v1246 = vpop.f32.mrf.mxu0
        %v1247 = vadd.f32 0.0, %v1246
        %1248 = vdwg.mxu0
        %1249 = vmatpush.bf16.msra.mxu0 %v797
        %1250 = vmatpush.bf16.msra.mxu0 %v796
        %1251 = vmatpush.bf16.msra.mxu0 %v795
        %1252 = vmatpush.bf16.msra.mxu0 %v794
        %1253 = vmatpush.bf16.msra.mxu0 %v793
        %1254 = vmatpush.bf16.msra.mxu0 %v792
        %1255 = vmatpush.bf16.msra.mxu0 %v791
        %1256 = vmatpush.bf16.msra.mxu0 %v790
        %1257 = vmatmul.bf16.gmra.mxu0 %v1185
        %v1258 = vpop.f32.mrf.mxu0
        %v1259 = vadd.f32 %v1210, %v1258
        %v1260 = vpop.f32.mrf.mxu0
        %v1261 = vadd.f32 %v1212, %v1260
        %1262 = vmatmul.bf16.gmra.mxu0 %v1187
        %v1263 = vpop.f32.mrf.mxu0
        %v1264 = vadd.f32 %v1215, %v1263
        %v1265 = vpop.f32.mrf.mxu0
        %v1266 = vadd.f32 %v1217, %v1265
        %1267 = vmatmul.bf16.gmra.mxu0 %v1189
        %v1268 = vpop.f32.mrf.mxu0
        %v1269 = vadd.f32 %v1220, %v1268
        %v1270 = vpop.f32.mrf.mxu0
        %v1271 = vadd.f32 %v1222, %v1270
        %1272 = vmatmul.bf16.gmra.mxu0 %v1191
        %v1273 = vpop.f32.mrf.mxu0
        %v1274 = vadd.f32 %v1225, %v1273
        %v1275 = vpop.f32.mrf.mxu0
        %v1276 = vadd.f32 %v1227, %v1275
        %1277 = vmatmul.bf16.gmra.mxu0 %v1193
        %v1278 = vpop.f32.mrf.mxu0
        %v1279 = vadd.f32 %v1230, %v1278
        %v1280 = vpop.f32.mrf.mxu0
        %v1281 = vadd.f32 %v1232, %v1280
        %1282 = vmatmul.bf16.gmra.mxu0 %v1195
        %v1283 = vpop.f32.mrf.mxu0
        %v1284 = vadd.f32 %v1235, %v1283
        %v1285 = vpop.f32.mrf.mxu0
        %v1286 = vadd.f32 %v1237, %v1285
        %1287 = vmatmul.bf16.gmra.mxu0 %v1197
        %v1288 = vpop.f32.mrf.mxu0
        %v1289 = vadd.f32 %v1240, %v1288
        %v1290 = vpop.f32.mrf.mxu0
        %v1291 = vadd.f32 %v1242, %v1290
        %1292 = vmatmul.bf16.gmra.mxu0 %v1199
        %v1293 = vpop.f32.mrf.mxu0
        %v1294 = vadd.f32 %v1245, %v1293
        %v1295 = vpop.f32.mrf.mxu0
        %v1296 = vadd.f32 %v1247, %v1295
        %1297 = vdwg.mxu0
        %v1298 = vmul.f32 %v1259, %v733
        %v1299 = vmul.f32 %v1261, %v734
        %v1300 = vmul.f32 %v1264, %v735
        %v1301 = vmul.f32 %v1266, %v736
        %v1302 = vmul.f32 %v1269, %v737
        %v1303 = vmul.f32 %v1271, %v738
        %v1304 = vmul.f32 %v1274, %v739
        %v1305 = vmul.f32 %v1276, %v740
        %v1306 = vmul.f32 %v1279, %v741
        %v1307 = vmul.f32 %v1281, %v742
        %v1308 = vmul.f32 %v1284, %v743
        %v1309 = vmul.f32 %v1286, %v744
        %v1310 = vmul.f32 %v1289, %v745
        %v1311 = vmul.f32 %v1291, %v746
        %v1312 = vmul.f32 %v1294, %v747
        %v1313 = vmul.f32 %v1296, %v748
        %v1314 = vadd.f32 %v1298, %v1300
        %v1315 = vadd.f32 %v1314, %v1302
        %v1316 = vadd.f32 %v1315, %v1304
        %v1317 = vadd.f32 %v1316, %v1306
        %v1318 = vadd.f32 %v1317, %v1308
        %v1319 = vadd.f32 %v1318, %v1310
        %v1320 = vadd.f32 %v1319, %v1312
        %v1321 = vadd.f32 %v1299, %v1301
        %v1322 = vadd.f32 %v1321, %v1303
        %v1323 = vadd.f32 %v1322, %v1305
        %v1324 = vadd.f32 %v1323, %v1307
        %v1325 = vadd.f32 %v1324, %v1309
        %v1326 = vadd.f32 %v1325, %v1311
        %v1327 = vadd.f32 %v1326, %v1313
        %v1328 = vpack.c.bf16 %v1327, %v1320
        %v1330 = vperm.slane %v765, 0
        %v1348 = vunpack.c.l.b16 %v749
        %v1349 = vunpack.c.l.b16 %v750
        %v1350 = vunpack.c.l.b16 %v751
        %v1351 = vunpack.c.l.b16 %v752
        %v1352 = vunpack.c.l.b16 %v753
        %v1353 = vunpack.c.l.b16 %v754
        %v1354 = vunpack.c.l.b16 %v755
        %v1355 = vunpack.c.l.b16 %v756
        %v1356 = vunpack.c.l.b16 %v757
        %v1357 = vunpack.c.l.b16 %v758
        %v1358 = vunpack.c.l.b16 %v759
        %v1359 = vunpack.c.l.b16 %v760
        %v1360 = vunpack.c.l.b16 %v761
        %v1361 = vunpack.c.l.b16 %v762
        %v1362 = vunpack.c.l.b16 %v763
        %v1363 = vunpack.c.l.b16 %v764
        %v1364 = vpack.c.b16 %v1349, %v1348
        %v1365 = vpack.c.b16 %v1351, %v1350
        %v1366 = vpack.c.b16 %v1353, %v1352
        %v1367 = vpack.c.b16 %v1355, %v1354
        %v1368 = vpack.c.b16 %v1357, %v1356
        %v1369 = vpack.c.b16 %v1359, %v1358
        %v1370 = vpack.c.b16 %v1361, %v1360
        %v1371 = vpack.c.b16 %v1363, %v1362
        %1380 = vmatpush.bf16.msra.mxu0 %v1371
        %1381 = vmatpush.bf16.msra.mxu0 %v1370
        %1382 = vmatpush.bf16.msra.mxu0 %v1369
        %1383 = vmatpush.bf16.msra.mxu0 %v1368
        %1384 = vmatpush.bf16.msra.mxu0 %v1367
        %1385 = vmatpush.bf16.msra.mxu0 %v1366
        %1386 = vmatpush.bf16.msra.mxu0 %v1365
        %1387 = vmatpush.bf16.msra.mxu0 %v1364
        %1388 = vmatmul.bf16.gmra.mxu0 %v1328
        %v1389 = vpop.f32.mrf.mxu0
        %v1390 = vadd.f32 %v1330, %v1389
        %v1391 = vpop.f32.mrf.mxu0
        %v1392 = vadd.f32 %v1330, %v1391
        %1393 = vdwg.mxu0
        %1394 = vst [vmem:[%s271] sm:$0xff] %v1390
        %1395 = vst [vmem:[%s271 + $0x8] sm:$0xff] %v1392
        %s1396 = sand.u32 %s181, 1
        %s1397 = scalar_lea.sflag [#allocation3], %s1396
        %s1398 = sand.u32 %s181, 1
        %s1399 = smul.addr %s1398, 16
        %s1400 = scalar_lea.vmem [#allocation2], %s1399
        // Predicated region
        $region49: #{learnable_sampler.1} parent=47 // pred_check
          %p1401 = pneg %p191
        $region50: #{learnable_sampler.1} parent=47 // pred_check_branch
          %1403 = sbr.rel (%p1401) target = $region52
        $region51: #{learnable_sampler.1} parent=47 // pred_region
          %1405 = vsyncadd %s1397, 0
          %s1406 = smul.addr %s21, 2
          %s1407 = smul.addr %s1406, 8
          %s1408 = scalar_lea.hbm %s7, %s1407
          %s1409 = sshll.u32 %s1400, 4
          %s1410 = int_to_ptr.vmem [resolvable:$true] %s1409
          %s1411 = sshll.u32 %s1408, 4
          %s1412 = int_to_ptr.hbm [resolvable:$true] %s1411
          %1417 = dma.vmem_to_hbm [thread:$0]  %s1410, 256, %s1412, %s1397, 128, 128, 8
        $region52: #{learnable_sampler.1} parent=47 // pred_fallthru
          _
      $region48: #{learnable_sampler.1} parent=5 // pred_fallthru
        _
      %p1418 = scmp.le.s32.totalorder 2, %s16
      // Predicated region
      $region53: #{learnable_sampler.1} parent=5 // pred_check
        %p1419 = pneg %p1418
      $region54: #{learnable_sampler.1} parent=5 // pred_check_branch
        %1421 = sbr.rel (%p1419) target = $region56
      $region55: #{learnable_sampler.1} parent=5 // pred_region
        %s1422 = ssub.s32 %s16, 2
        // Predicated region
        $region57: #{learnable_sampler.1} parent=55 // pred_check
          %p1423 = pneg %p197
        $region58: #{learnable_sampler.1} parent=55 // pred_check_branch
          %1425 = sbr.rel (%p1423) target = $region60
        $region59: #{learnable_sampler.1} parent=55 // pred_region
          %s1426 = sand.u32 %s182, 1
          %s1427 = scalar_lea.sflag [#allocation3], %s1426
          %s1428 = sand.u32 %s182, 1
          %s1429 = smul.addr %s1428, 16
          %s1430 = scalar_lea.vmem [#allocation2], %s1429
          %1432 = dma.done %s1427, 256
        $region60: #{learnable_sampler.1} parent=55 // pred_fallthru
          _
      $region56: #{learnable_sampler.1} parent=5 // pred_fallthru
        _
    $region6: #{learnable_sampler.1} parent=1 // loop_footer
      %s20 = sadd.s32 1, %s16
    $region7: #{learnable_sampler.1} parent=1 // loop_footer_branch
      %15 = sbr.rel target = $region3
    $region8: #{learnable_sampler.1} parent=1 // loop_exit
      _
    %1433 = vsyncpa [#allocation3], 1
    %s1434 = scalar_lea.sflag [#allocation3], 1
    %1435 = vsyncpa %s1434, 1

</llo_original>
